<compile_context>
chip_gen: v7x
topology: tpu7x:2x2x1
jax: 0.10.0
libtpu: 0.0.40
codegen_flags: <defaults>
</compile_context>

<pallas_src>
import functools
import math

import numpy as np
import jax
import jax.numpy as jnp
from jax.experimental import pallas as pl
from jax.experimental.pallas import tpu as pltpu


def _round_up(x, m):
    return (x + m - 1) // m * m


def _num_grid_steps(n_images):
    """Grid length: 1 on single-TC chips (v5e/v6e), 2 on 2-TC chips (v7x / megacore)."""
    try:
        kind = jax.devices()[0].device_kind.lower()
    except Exception:
        kind = ""
    single_tc = ("v5 lite" in kind) or ("v5e" in kind) or ("v6" in kind)
    if (not single_tc) and n_images >= 2 and n_images % 2 == 0:
        return 2
    return 1


def _conv_block_kernel(x_ref, w1_ref, w2_ref, b1_ref, b2_ref, mask_ref,
                       o_ref, mid_ref, *,
                       K1, K2, Wp1, Wp2, L1, L2p, LX, M1, A, lead, IPS):
    """Fused conv1 + lrelu + conv2 + lrelu for IPS lane-packed images.

    x_ref:    (1, Cin_pad, IPS*LX)       bf16  row-flattened, spatially padded inputs
    w1_ref:   (Cout_pad, K1*K1*Cin_pad)  bf16  EqualLR-scaled, tap-major / channel-minor
    w2_ref:   (Cout_pad, K2*K2*Cout_pad) bf16
    b1_ref:   (Cout_pad, 1) f32
    b2_ref:   (Cout_pad, 1) f32
    mask_ref: (1, IPS*L1)   f32  1.0 on valid wide columns, 0.0 on row-wrap garbage columns
    o_ref:    (1, IPS, Cout_pad, L2p) f32  wide conv2 output, lane-padded to a 128 multiple
    mid_ref:  (Cout_pad, IPS*M1) bf16 scratch holding the zero-bordered padded intermediate
    """
    # Scratch is uninitialized and per-core ("parallel" grid); zero it each step (tiny) so
    # the lanes around each image's act1 window provide conv2's zero padding.
    mid_ref[...] = jnp.zeros_like(mid_ref)

    x = x_ref[0]                                              # (Cin_pad, IPS*LX) bf16

    # ---- conv1: one im2col MXU matmul over all lane-packed images ------------
    slabs1 = []
    for b in range(IPS):
        base = b * LX
        slabs1.append(jnp.concatenate(
            [x[:, base + kh * Wp1 + kw: base + kh * Wp1 + kw + L1]
             for kh in range(K1) for kw in range(K1)], axis=0))   # (K1*K1*Cin_pad, L1)
    rhs1 = slabs1[0] if IPS == 1 else jnp.concatenate(slabs1, axis=1)
    act1 = jnp.dot(w1_ref[...], rhs1, preferred_element_type=jnp.float32)
    act1 = act1 + b1_ref[...]                                 # lane-broadcast bias
    act1 = jnp.where(act1 >= 0.0, act1, 0.2 * act1)           # LeakyReLU(0.2), f32
    act1 = (act1 * mask_ref[...]).astype(jnp.bfloat16)        # zero wrap cols; bf16 for conv2

    # ---- scatter act1 into the zero-bordered scratch at 128-aligned offsets ---
    for b in range(IPS):
        mid_ref[:, b * M1 + A: b * M1 + A + L1] = act1[:, b * L1:(b + 1) * L1]

    mid = mid_ref[...]                                        # (Cout_pad, IPS*M1) bf16

    # ---- conv2: one im2col MXU matmul (offsets shifted by A - lead) -----------
    slabs2 = []
    for b in range(IPS):
        base = b * M1 + A - lead
        slabs2.append(jnp.concatenate(
            [mid[:, base + kh * Wp2 + kw: base + kh * Wp2 + kw + L2p]
             for kh in range(K2) for kw in range(K2)], axis=0))   # (K2*K2*Cout_pad, L2p)
    rhs2 = slabs2[0] if IPS == 1 else jnp.concatenate(slabs2, axis=1)
    act2 = jnp.dot(w2_ref[...], rhs2, preferred_element_type=jnp.float32)
    act2 = act2 + b2_ref[...]
    act2 = jnp.where(act2 >= 0.0, act2, 0.2 * act2)

    # ---- per-image 128-multiple lane-dense stores ------------------------------
    for b in range(IPS):
        o_ref[0, b, :, :] = act2[:, b * L2p:(b + 1) * L2p].astype(o_ref.dtype)


def _prep_weight(w_oihw, cin_pad, cout_pad):
    """OIHW -> (cout_pad, K*K*cin_pad) with EqualLR scale, tap-major/channel-minor, bf16."""
    co, ci, k, _ = w_oihw.shape
    scale = math.sqrt(2.0 / (ci * k * k))          # fan_in uses the ORIGINAL in_channels
    wm = jnp.transpose(w_oihw * scale, (0, 2, 3, 1))                 # (co, k, k, ci)
    wm = jnp.pad(wm, ((0, cout_pad - co), (0, 0), (0, 0), (0, cin_pad - ci)))
    return wm.reshape(cout_pad, k * k * cin_pad).astype(jnp.bfloat16)


def conv_block_forward(x_nchw, w1, b1, w2, b2, pad1, pad2):
    """ConvBlock.forward (downsample=False). NCHW in, NCHW out (PyTorch convention)."""
    N, Cin, H, W = x_nchw.shape
    Cout, _, K1, _ = w1.shape
    _, _, K2, _ = w2.shape

    # The fused single-pass layout chains the two convs in the same flattened row stride.
    # Holds for the default ConvBlock config (k1 == k2, pad1 == pad2, "same" conv).
    assert 2 * pad2 == K1 - 1, "fused kernel requires W + 2*pad1 == (conv1 out W) + 2*pad2"

    Hp1, Wp1 = H + 2 * pad1, W + 2 * pad1
    H1, W1 = Hp1 - K1 + 1, Wp1 - K1 + 1            # conv1 output spatial dims
    Hp2, Wp2 = H1 + 2 * pad2, W1 + 2 * pad2        # padded intermediate dims
    assert Wp2 == Wp1
    H2, W2 = Hp2 - K2 + 1, Wp2 - K2 + 1            # conv2 output spatial dims

    L1 = H1 * Wp1                                  # wide conv1 output width (per image)
    L2 = H2 * Wp2                                  # valid wide conv2 output width
    L2p = _round_up(L2, 128)                       # lane-dense output width
    LX = _round_up(L1 + (K1 - 1) * (Wp1 + 1), 128)  # per-image flattened input lane stride
    lead = pad2 * (Wp2 + 1)                        # act1 offset inside the padded intermediate
    A = _round_up(lead, 128)                       # 128-aligned act1 offset in the scratch
    M1 = _round_up(max(A + L1, A - lead + (K2 - 1) * (Wp2 + 1) + L2p), 128)

    Cin_pad = _round_up(Cin, 8)
    Cout_pad = _round_up(Cout, 8)

    num_steps = _num_grid_steps(N)
    IPS = N // num_steps                           # images lane-packed per grid step

    # ---- input prep: spatial pad + flatten + channel pad + bf16 + lane-pack batch ----
    xpad = jnp.pad(x_nchw, ((0, 0), (0, 0), (pad1, pad1), (pad1, pad1)))
    xflat = xpad.reshape(N, Cin, Hp1 * Wp1)
    xflat = jnp.pad(xflat, ((0, 0), (0, Cin_pad - Cin), (0, LX - Hp1 * Wp1)))
    xflat = xflat.astype(jnp.bfloat16)
    xflat = (xflat.reshape(num_steps, IPS, Cin_pad, LX)
             .transpose(0, 2, 1, 3)
             .reshape(num_steps, Cin_pad, IPS * LX))

    w1m = _prep_weight(w1, Cin_pad, Cout_pad)      # (Cout_pad, K1*K1*Cin_pad) bf16
    w2m = _prep_weight(w2, Cout_pad, Cout_pad)     # (Cout_pad, K2*K2*Cout_pad) bf16
    b1c = jnp.pad(b1, (0, Cout_pad - Cout)).reshape(Cout_pad, 1).astype(jnp.float32)
    b2c = jnp.pad(b2, (0, Cout_pad - Cout)).reshape(Cout_pad, 1).astype(jnp.float32)

    # Mask for the row-wrap ("garbage") columns of the wide conv1 output, tiled per image.
    cols = np.arange(L1) % Wp1
    mask = jnp.asarray(np.tile((cols < W1).astype(np.float32), IPS)).reshape(1, IPS * L1)

    kernel = functools.partial(
        _conv_block_kernel, K1=K1, K2=K2, Wp1=Wp1, Wp2=Wp2,
        L1=L1, L2p=L2p, LX=LX, M1=M1, A=A, lead=lead, IPS=IPS)

    out_wide = pl.pallas_call(
        kernel,
        out_shape=jax.ShapeDtypeStruct((num_steps, IPS, Cout_pad, L2p), jnp.float32),
        grid_spec=pltpu.PrefetchScalarGridSpec(
            num_scalar_prefetch=0,
            grid=(num_steps,),
            in_specs=[
                pl.BlockSpec((1, Cin_pad, IPS * LX), lambda n: (n, 0, 0)),
                pl.BlockSpec((Cout_pad, K1 * K1 * Cin_pad), lambda n: (0, 0)),
                pl.BlockSpec((Cout_pad, K2 * K2 * Cout_pad), lambda n: (0, 0)),
                pl.BlockSpec((Cout_pad, 1), lambda n: (0, 0)),
                pl.BlockSpec((Cout_pad, 1), lambda n: (0, 0)),
                pl.BlockSpec((1, IPS * L1), lambda n: (0, 0)),
            ],
            out_specs=pl.BlockSpec((1, IPS, Cout_pad, L2p), lambda n: (n, 0, 0, 0)),
            scratch_shapes=[pltpu.VMEM((Cout_pad, IPS * M1), jnp.bfloat16)],
        ),
        compiler_params=pltpu.CompilerParams(
            dimension_semantics=("parallel",)),      # 2-TC chips (v7x) split the batch steps
    )(xflat, w1m, w2m, b1c, b2c, mask)

    # Wide -> NCHW: drop channel/lane padding and the per-row wrap columns.
    out = out_wide.reshape(N, Cout_pad, L2p)[:, :Cout, :L2]
    return out.reshape(N, Cout, H2, Wp2)[:, :, :, :W2]


def _reference(x_nchw, w1, b1, w2, b2, pad1, pad2):
    """Plain-JAX reference with matched precision (bf16 matmul operands, f32 accumulate)."""
    def one(x, w_oihw, b, pad):
        co, ci, k, _ = w_oihw.shape
        scale = math.sqrt(2.0 / (ci * k * k))
        w_bf = (w_oihw * scale).astype(jnp.bfloat16)
        y = jax.lax.conv_general_dilated(
            x.astype(jnp.bfloat16), w_bf, window_strides=(1, 1),
            padding=[(pad, pad), (pad, pad)],
            dimension_numbers=("NCHW", "OIHW", "NCHW"),
            preferred_element_type=jnp.float32)
        y = y + b.reshape(1, co, 1, 1)
        return jnp.where(y >= 0.0, y, 0.2 * y)

    y = one(x_nchw, w1, b1, pad1)
    y = one(y, w2, b2, pad2)
    return y


if __name__ == "__main__":
    # Small shapes consistent with the module: N=2, Cin=4, H=W=16, Cout=8, k=3, pad=1.
    N, CIN, H, W = 2, 4, 16, 16
    COUT, K, PAD = 8, 3, 1

    key = jax.random.PRNGKey(0)
    k_x, k_w1, k_w2 = jax.random.split(key, 3)

    x = jax.random.normal(k_x, (N, CIN, H, W), jnp.float32)        # NCHW input
    w1 = jax.random.normal(k_w1, (COUT, CIN, K, K), jnp.float32)   # weight.normal_()
    b1 = jnp.zeros((COUT,), jnp.float32)                           # bias.zero_()
    w2 = jax.random.normal(k_w2, (COUT, COUT, K, K), jnp.float32)
    b2 = jnp.zeros((COUT,), jnp.float32)

    fwd = jax.jit(lambda x, w1, b1, w2, b2: conv_block_forward(x, w1, b1, w2, b2, PAD, PAD))
    out = jax.block_until_ready(fwd(x, w1, b1, w2, b2))

    ref = jax.block_until_ready(_reference(x, w1, b1, w2, b2, PAD, PAD))
    assert out.shape == (N, COUT, H, W), out.shape
    assert jnp.allclose(out, ref, rtol=1e-3, atol=1e-3), float(
        jnp.max(jnp.abs(out - ref)))

    print("KERNEL_OK")
</pallas_src>

<mosaic_0001>
module attributes {stable_mosaic.version = 11 : i64} {
  func.func @_conv_block_kernel(%arg0: i32, %arg1: memref<1x8x384xbf16, #tpu.memory_space<vmem>>, %arg2: memref<8x72xbf16, #tpu.memory_space<vmem>>, %arg3: memref<8x72xbf16, #tpu.memory_space<vmem>>, %arg4: memref<8x1xf32, #tpu.memory_space<vmem>>, %arg5: memref<8x1xf32, #tpu.memory_space<vmem>>, %arg6: memref<1x288xf32, #tpu.memory_space<vmem>>, %arg7: memref<1x1x8x384xf32, #tpu.memory_space<vmem>>, %arg8: memref<8x640xbf16, #tpu.memory_space<vmem>>) attributes {dimension_semantics = [#tpu.dimension_semantics<parallel>], iteration_bounds = array<i64: 2>, scalar_prefetch = 0 : i64, scratch_operands = 1 : i64, tpu.core_type = #tpu.core_type<tc>, window_params = [{transform_indices = @transform_0, window_bounds = array<i64: 1, 8, 384>}, {pipeline_mode = #tpu.pipeline_mode<synchronous>, transform_indices = @transform_1, window_bounds = array<i64: 8, 72>}, {pipeline_mode = #tpu.pipeline_mode<synchronous>, transform_indices = @transform_2, window_bounds = array<i64: 8, 72>}, {pipeline_mode = #tpu.pipeline_mode<synchronous>, transform_indices = @transform_3, window_bounds = array<i64: 8, 1>}, {pipeline_mode = #tpu.pipeline_mode<synchronous>, transform_indices = @transform_4, window_bounds = array<i64: 8, 1>}, {pipeline_mode = #tpu.pipeline_mode<synchronous>, transform_indices = @transform_5, window_bounds = array<i64: 1, 288>}, {transform_indices = @transform_6, window_bounds = array<i64: 1, 1, 8, 384>}]} {
    %cst = arith.constant 0.000000e+00 : bf16
    %0 = vector.broadcast %cst : bf16 to vector<8x640xbf16>
    %c0 = arith.constant 0 : index
    %c0_0 = arith.constant 0 : index
    %1 = vector.load %arg8[%c0, %c0_0] : memref<8x640xbf16, #tpu.memory_space<vmem>>, vector<8x640xbf16>
    tpu.vector_store %arg8[%c0, %c0_0], %0 {strides = array<i32>} : memref<8x640xbf16, #tpu.memory_space<vmem>>, vector<8x640xbf16>,
    %c0_1 = arith.constant 0 : index
    %c0_2 = arith.constant 0 : index
    %c0_3 = arith.constant 0 : index
    %2 = vector.load %arg1[%c0_1, %c0_2, %c0_3] : memref<1x8x384xbf16, #tpu.memory_space<vmem>>, vector<1x8x384xbf16>
    %3 = vector.shape_cast %2 : vector<1x8x384xbf16> to vector<8x384xbf16>
    %4 = vector.extract_strided_slice %3 {offsets = [0, 0], sizes = [8, 288], strides = [1, 1]} : vector<8x384xbf16> to vector<8x288xbf16>
    %5 = vector.extract_strided_slice %3 {offsets = [0, 1], sizes = [8, 288], strides = [1, 1]} : vector<8x384xbf16> to vector<8x288xbf16>
    %6 = vector.extract_strided_slice %3 {offsets = [0, 2], sizes = [8, 288], strides = [1, 1]} : vector<8x384xbf16> to vector<8x288xbf16>
    %7 = vector.extract_strided_slice %3 {offsets = [0, 18], sizes = [8, 288], strides = [1, 1]} : vector<8x384xbf16> to vector<8x288xbf16>
    %8 = vector.extract_strided_slice %3 {offsets = [0, 19], sizes = [8, 288], strides = [1, 1]} : vector<8x384xbf16> to vector<8x288xbf16>
    %9 = vector.extract_strided_slice %3 {offsets = [0, 20], sizes = [8, 288], strides = [1, 1]} : vector<8x384xbf16> to vector<8x288xbf16>
    %10 = vector.extract_strided_slice %3 {offsets = [0, 36], sizes = [8, 288], strides = [1, 1]} : vector<8x384xbf16> to vector<8x288xbf16>
    %11 = vector.extract_strided_slice %3 {offsets = [0, 37], sizes = [8, 288], strides = [1, 1]} : vector<8x384xbf16> to vector<8x288xbf16>
    %12 = vector.extract_strided_slice %3 {offsets = [0, 38], sizes = [8, 288], strides = [1, 1]} : vector<8x384xbf16> to vector<8x288xbf16>
    %13 = tpu.concatenate %4, %5, %6, %7, %8, %9, %10, %11, %12 in 0 : vector<8x288xbf16>, vector<8x288xbf16>, vector<8x288xbf16>, vector<8x288xbf16>, vector<8x288xbf16>, vector<8x288xbf16>, vector<8x288xbf16>, vector<8x288xbf16>, vector<8x288xbf16> -> vector<72x288xbf16>
    %c0_4 = arith.constant 0 : index
    %c0_5 = arith.constant 0 : index
    %14 = vector.load %arg2[%c0_4, %c0_5] : memref<8x72xbf16, #tpu.memory_space<vmem>>, vector<8x72xbf16>
    %cst_6 = arith.constant dense<0.000000e+00> : vector<8x288xf32>
    %15 = tpu.matmul %14, %13, %cst_6 {dimension_numbers = #tpu.dot_dimension_numbers<[1], [0], [0], [1], [0, 0, 1, 1], [], []>} : vector<8x72xbf16>, vector<72x288xbf16>, vector<8x288xf32> -> vector<8x288xf32>
    %c0_7 = arith.constant 0 : index
    %c0_8 = arith.constant 0 : index
    %16 = vector.load %arg4[%c0_7, %c0_8] : memref<8x1xf32, #tpu.memory_space<vmem>>, vector<8x1xf32>
    %17 = vector.broadcast %16 : vector<8x1xf32> to vector<8x288xf32>
    %18 = arith.addf %15, %17 : vector<8x288xf32>
    %cst_9 = arith.constant 0.000000e+00 : f32
    %19 = vector.broadcast %cst_9 : f32 to vector<8x288xf32>
    %20 = arith.cmpf oge, %18, %19 : vector<8x288xf32>
    %cst_10 = arith.constant 2.000000e-01 : f32
    %21 = vector.broadcast %cst_10 : f32 to vector<8x288xf32>
    %22 = arith.mulf %21, %18 : vector<8x288xf32>
    %23 = arith.select %20, %18, %22 : vector<8x288xi1>, vector<8x288xf32>
    %c0_11 = arith.constant 0 : index
    %c0_12 = arith.constant 0 : index
    %24 = vector.load %arg6[%c0_11, %c0_12] : memref<1x288xf32, #tpu.memory_space<vmem>>, vector<1x288xf32>
    %25 = vector.broadcast %24 : vector<1x288xf32> to vector<8x288xf32>
    %26 = arith.mulf %23, %25 : vector<8x288xf32>
    %27 = arith.truncf %26 : vector<8x288xf32> to vector<8x288xbf16>
    %c0_13 = arith.constant 0 : index
    %c128 = arith.constant 128 : index
    %28 = vector.load %arg8[%c0_13, %c128] : memref<8x640xbf16, #tpu.memory_space<vmem>>, vector<8x288xbf16>
    tpu.vector_store %arg8[%c0_13, %c128], %27 {strides = array<i32>} : memref<8x640xbf16, #tpu.memory_space<vmem>>, vector<8x288xbf16>,
    %c0_14 = arith.constant 0 : index
    %c0_15 = arith.constant 0 : index
    %29 = vector.load %arg8[%c0_14, %c0_15] : memref<8x640xbf16, #tpu.memory_space<vmem>>, vector<8x640xbf16>
    %30 = vector.extract_strided_slice %29 {offsets = [0, 109], sizes = [8, 384], strides = [1, 1]} : vector<8x640xbf16> to vector<8x384xbf16>
    %31 = vector.extract_strided_slice %29 {offsets = [0, 110], sizes = [8, 384], strides = [1, 1]} : vector<8x640xbf16> to vector<8x384xbf16>
    %32 = vector.extract_strided_slice %29 {offsets = [0, 111], sizes = [8, 384], strides = [1, 1]} : vector<8x640xbf16> to vector<8x384xbf16>
    %33 = vector.extract_strided_slice %29 {offsets = [0, 127], sizes = [8, 384], strides = [1, 1]} : vector<8x640xbf16> to vector<8x384xbf16>
    %34 = vector.extract_strided_slice %29 {offsets = [0, 128], sizes = [8, 384], strides = [1, 1]} : vector<8x640xbf16> to vector<8x384xbf16>
    %35 = vector.extract_strided_slice %29 {offsets = [0, 129], sizes = [8, 384], strides = [1, 1]} : vector<8x640xbf16> to vector<8x384xbf16>
    %36 = vector.extract_strided_slice %29 {offsets = [0, 145], sizes = [8, 384], strides = [1, 1]} : vector<8x640xbf16> to vector<8x384xbf16>
    %37 = vector.extract_strided_slice %29 {offsets = [0, 146], sizes = [8, 384], strides = [1, 1]} : vector<8x640xbf16> to vector<8x384xbf16>
    %38 = vector.extract_strided_slice %29 {offsets = [0, 147], sizes = [8, 384], strides = [1, 1]} : vector<8x640xbf16> to vector<8x384xbf16>
    %39 = tpu.concatenate %30, %31, %32, %33, %34, %35, %36, %37, %38 in 0 : vector<8x384xbf16>, vector<8x384xbf16>, vector<8x384xbf16>, vector<8x384xbf16>, vector<8x384xbf16>, vector<8x384xbf16>, vector<8x384xbf16>, vector<8x384xbf16>, vector<8x384xbf16> -> vector<72x384xbf16>
    %c0_16 = arith.constant 0 : index
    %c0_17 = arith.constant 0 : index
    %40 = vector.load %arg3[%c0_16, %c0_17] : memref<8x72xbf16, #tpu.memory_space<vmem>>, vector<8x72xbf16>
    %cst_18 = arith.constant dense<0.000000e+00> : vector<8x384xf32>
    %41 = tpu.matmul %40, %39, %cst_18 {dimension_numbers = #tpu.dot_dimension_numbers<[1], [0], [0], [1], [0, 0, 1, 1], [], []>} : vector<8x72xbf16>, vector<72x384xbf16>, vector<8x384xf32> -> vector<8x384xf32>
    %c0_19 = arith.constant 0 : index
    %c0_20 = arith.constant 0 : index
    %42 = vector.load %arg5[%c0_19, %c0_20] : memref<8x1xf32, #tpu.memory_space<vmem>>, vector<8x1xf32>
    %43 = vector.broadcast %42 : vector<8x1xf32> to vector<8x384xf32>
    %44 = arith.addf %41, %43 : vector<8x384xf32>
    %cst_21 = arith.constant 0.000000e+00 : f32
    %45 = vector.broadcast %cst_21 : f32 to vector<8x384xf32>
    %46 = arith.cmpf oge, %44, %45 : vector<8x384xf32>
    %cst_22 = arith.constant 2.000000e-01 : f32
    %47 = vector.broadcast %cst_22 : f32 to vector<8x384xf32>
    %48 = arith.mulf %47, %44 : vector<8x384xf32>
    %49 = arith.select %46, %44, %48 : vector<8x384xi1>, vector<8x384xf32>
    %c0_23 = arith.constant 0 : index
    %c0_24 = arith.constant 0 : index
    %c0_25 = arith.constant 0 : index
    %c0_26 = arith.constant 0 : index
    %50 = vector.load %arg7[%c0_23, %c0_24, %c0_25, %c0_26] : memref<1x1x8x384xf32, #tpu.memory_space<vmem>>, vector<1x1x8x384xf32>
    %51 = vector.shape_cast %50 : vector<1x1x8x384xf32> to vector<8x384xf32>
    %52 = vector.shape_cast %49 : vector<8x384xf32> to vector<1x1x8x384xf32>
    tpu.vector_store %arg7[%c0_23, %c0_24, %c0_25, %c0_26], %52 {strides = array<i32>} : memref<1x1x8x384xf32, #tpu.memory_space<vmem>>, vector<1x1x8x384xf32>,
    return
  }
  func.func @transform_0(%arg0: i32) -> (i32, i32, i32) {
    %c0_i32 = arith.constant 0 : i32
    %c0_i32_0 = arith.constant 0 : i32
    %c0_i32_1 = arith.constant 0 : i32
    return %arg0, %c0_i32, %c0_i32_0 : i32, i32, i32
  }
  func.func @transform_1(%arg0: i32) -> (i32, i32) {
    %c0_i32 = arith.constant 0 : i32
    %c0_i32_0 = arith.constant 0 : i32
    %c0_i32_1 = arith.constant 0 : i32
    return %c0_i32, %c0_i32_0 : i32, i32
  }
  func.func @transform_2(%arg0: i32) -> (i32, i32) {
    %c0_i32 = arith.constant 0 : i32
    %c0_i32_0 = arith.constant 0 : i32
    %c0_i32_1 = arith.constant 0 : i32
    return %c0_i32, %c0_i32_0 : i32, i32
  }
  func.func @transform_3(%arg0: i32) -> (i32, i32) {
    %c0_i32 = arith.constant 0 : i32
    %c0_i32_0 = arith.constant 0 : i32
    %c0_i32_1 = arith.constant 0 : i32
    return %c0_i32, %c0_i32_0 : i32, i32
  }
  func.func @transform_4(%arg0: i32) -> (i32, i32) {
    %c0_i32 = arith.constant 0 : i32
    %c0_i32_0 = arith.constant 0 : i32
    %c0_i32_1 = arith.constant 0 : i32
    return %c0_i32, %c0_i32_0 : i32, i32
  }
  func.func @transform_5(%arg0: i32) -> (i32, i32) {
    %c0_i32 = arith.constant 0 : i32
    %c0_i32_0 = arith.constant 0 : i32
    %c0_i32_1 = arith.constant 0 : i32
    return %c0_i32, %c0_i32_0 : i32, i32
  }
  func.func @transform_6(%arg0: i32) -> (i32, i32, i32, i32) {
    %c0_i32 = arith.constant 0 : i32
    %c0_i32_0 = arith.constant 0 : i32
    %c0_i32_1 = arith.constant 0 : i32
    %c0_i32_2 = arith.constant 0 : i32
    return %arg0, %c0_i32, %c0_i32_0, %c0_i32_1 : i32, i32, i32, i32
  }
}

</mosaic_0001>

<llo_original>
// kernel: _lambda_.1
$region0: #{_lambda_.1}
  #allocation0 [shape = 'u32[]', space=smem, size = 0x4, offset = 0x4, fixed_abs, tag = 'smem constant byte address 0x4 - core index']
  #allocation1 [shape = 'u32[144,128]{1,0:T(1,128)}', space=vmem, size = 0x12000, scoped, tag = 'internal scratch']
  #allocation2 [shape = 'bf16[8,640]{1,0:T(8,128)(2,1)}', space=vmem, size = 0x2800, scoped, tag = 'scratch operand']
  %s0 = inlined_call_operand.vmem [shape: bf16[2,8,384], index: 0, kind: input, shape index: {}]
  %s1 = inlined_call_operand.vmem [shape: bf16[8,72], index: 1, kind: input, shape index: {}]
  %s2 = inlined_call_operand.vmem [shape: bf16[8,72], index: 2, kind: input, shape index: {}]
  %s3 = inlined_call_operand.vmem [shape: f32[8,1], index: 3, kind: input, shape index: {}]
  %s4 = inlined_call_operand.vmem [shape: f32[8,1], index: 4, kind: input, shape index: {}]
  %s5 = inlined_call_operand.vmem [shape: f32[1,288], index: 5, kind: input, shape index: {}]
  %s6 = inlined_call_operand.vmem [shape: f32[2,1,8,384], index: 6, kind: output, shape index: {}]
  %s7 = sld [smem:[#allocation0]]
  $region57: #{_lambda_.1} parent=0
    _
  %s9 = ssub.s32 1, %s7
  %s10 = scalar_select 0, %s9, %s7
  loop: start=0, step=1, limit=4
  $region2: #{_lambda_.1} parent=0 // loop_pre_header
    _
  $region3: #{_lambda_.1} parent=0 // loop_header
    %s12 = sphi 0, %s16
    %p13 = scmp.ge.s32.totalorder %s12, 4
    %s22 = sphi 0, %s24
    %s25 = sphi 0, %s22
    %s26 = sphi 0, %s25
    %s42 = sphi 0, %s26
    %s46 = sphi 0, %s46
    %s48 = sphi 0, %s46
    %s49 = sphi 0, %s48
    %s63 = sphi 0, %s49
    %s67 = sphi 0, %s67
    %s69 = sphi 0, %s67
    %s70 = sphi 0, %s69
    %s84 = sphi 0, %s70
    %s88 = sphi 0, %s88
    %s90 = sphi 0, %s88
    %s91 = sphi 0, %s90
    %s105 = sphi 0, %s91
    %s109 = sphi 0, %s109
    %s111 = sphi 0, %s109
    %s112 = sphi 0, %s111
    %s126 = sphi 0, %s112
    %s130 = sphi 0, %s130
    %s132 = sphi 0, %s130
    %s133 = sphi 0, %s132
    %s147 = sphi 0, %s133
    %s153 = sphi 0, %s155
    %s156 = sphi 0, %s153
    %s157 = sphi 0, %s156
    %s173 = sphi 0, %s157
  $region4: #{_lambda_.1} parent=0 // loop_header_branch
    %15 = sbr.rel (%p13) target = $region8
  $region5: #{_lambda_.1} parent=0 // loop_body
    %s17 = ssub.s32 %s12, 1
    %s18 = ssub.s32 %s12, 2
    %s19 = sadd.s32 %s12, 1
    %s20 = ssub.s32 %s12, %s19
    %p21 = scmp.eq.s32.totalorder %s20, 0
    %s23 = sadd.s32 %s22, 1
    %s24 = scalar_select %p21, %s22, %s23
    %p27 = pneg %p21
    %p28 = scmp.eq.s32.totalorder %s12, 1
    %p29 = por %p27, %p28
    %p30 = scmp.ne.s32.totalorder %s22, %s25
    %p31 = scmp.eq.s32.totalorder %s12, 0
    %p32 = por %p30, %p31
    %p33 = scmp.ne.s32.totalorder %s22, %s25
    %p34 = scmp.eq.s32.totalorder %s17, 1
    %p35 = por %p33, %p34
    %p36 = scmp.ne.s32.totalorder %s25, %s26
    %p37 = scmp.eq.s32.totalorder %s17, 0
    %p38 = por %p36, %p37
    %p39 = scmp.ne.s32.totalorder %s25, %s26
    %p40 = scmp.eq.s32.totalorder %s18, 1
    %p41 = por %p39, %p40
    %p43 = scmp.ne.s32.totalorder %s26, %s42
    %p44 = scmp.eq.s32.totalorder %s18, 0
    %p45 = por %p43, %p44
    %s47 = sadd.s32 %s46, 1
    %p50 = scmp.eq.s32.totalorder %s12, 1
    %p51 = scmp.ne.s32.totalorder %s46, %s48
    %p52 = scmp.eq.s32.totalorder %s12, 0
    %p53 = por %p51, %p52
    %p54 = scmp.ne.s32.totalorder %s46, %s48
    %p55 = scmp.eq.s32.totalorder %s17, 1
    %p56 = por %p54, %p55
    %p57 = scmp.ne.s32.totalorder %s48, %s49
    %p58 = scmp.eq.s32.totalorder %s17, 0
    %p59 = por %p57, %p58
    %p60 = scmp.ne.s32.totalorder %s48, %s49
    %p61 = scmp.eq.s32.totalorder %s18, 1
    %p62 = por %p60, %p61
    %p64 = scmp.ne.s32.totalorder %s49, %s63
    %p65 = scmp.eq.s32.totalorder %s18, 0
    %p66 = por %p64, %p65
    %s68 = sadd.s32 %s67, 1
    %p71 = scmp.eq.s32.totalorder %s12, 1
    %p72 = scmp.ne.s32.totalorder %s67, %s69
    %p73 = scmp.eq.s32.totalorder %s12, 0
    %p74 = por %p72, %p73
    %p75 = scmp.ne.s32.totalorder %s67, %s69
    %p76 = scmp.eq.s32.totalorder %s17, 1
    %p77 = por %p75, %p76
    %p78 = scmp.ne.s32.totalorder %s69, %s70
    %p79 = scmp.eq.s32.totalorder %s17, 0
    %p80 = por %p78, %p79
    %p81 = scmp.ne.s32.totalorder %s69, %s70
    %p82 = scmp.eq.s32.totalorder %s18, 1
    %p83 = por %p81, %p82
    %p85 = scmp.ne.s32.totalorder %s70, %s84
    %p86 = scmp.eq.s32.totalorder %s18, 0
    %p87 = por %p85, %p86
    %s89 = sadd.s32 %s88, 1
    %p92 = scmp.eq.s32.totalorder %s12, 1
    %p93 = scmp.ne.s32.totalorder %s88, %s90
    %p94 = scmp.eq.s32.totalorder %s12, 0
    %p95 = por %p93, %p94
    %p96 = scmp.ne.s32.totalorder %s88, %s90
    %p97 = scmp.eq.s32.totalorder %s17, 1
    %p98 = por %p96, %p97
    %p99 = scmp.ne.s32.totalorder %s90, %s91
    %p100 = scmp.eq.s32.totalorder %s17, 0
    %p101 = por %p99, %p100
    %p102 = scmp.ne.s32.totalorder %s90, %s91
    %p103 = scmp.eq.s32.totalorder %s18, 1
    %p104 = por %p102, %p103
    %p106 = scmp.ne.s32.totalorder %s91, %s105
    %p107 = scmp.eq.s32.totalorder %s18, 0
    %p108 = por %p106, %p107
    %s110 = sadd.s32 %s109, 1
    %p113 = scmp.eq.s32.totalorder %s12, 1
    %p114 = scmp.ne.s32.totalorder %s109, %s111
    %p115 = scmp.eq.s32.totalorder %s12, 0
    %p116 = por %p114, %p115
    %p117 = scmp.ne.s32.totalorder %s109, %s111
    %p118 = scmp.eq.s32.totalorder %s17, 1
    %p119 = por %p117, %p118
    %p120 = scmp.ne.s32.totalorder %s111, %s112
    %p121 = scmp.eq.s32.totalorder %s17, 0
    %p122 = por %p120, %p121
    %p123 = scmp.ne.s32.totalorder %s111, %s112
    %p124 = scmp.eq.s32.totalorder %s18, 1
    %p125 = por %p123, %p124
    %p127 = scmp.ne.s32.totalorder %s112, %s126
    %p128 = scmp.eq.s32.totalorder %s18, 0
    %p129 = por %p127, %p128
    %s131 = sadd.s32 %s130, 1
    %p134 = scmp.eq.s32.totalorder %s12, 1
    %p135 = scmp.ne.s32.totalorder %s130, %s132
    %p136 = scmp.eq.s32.totalorder %s12, 0
    %p137 = por %p135, %p136
    %p138 = scmp.ne.s32.totalorder %s130, %s132
    %p139 = scmp.eq.s32.totalorder %s17, 1
    %p140 = por %p138, %p139
    %p141 = scmp.ne.s32.totalorder %s132, %s133
    %p142 = scmp.eq.s32.totalorder %s17, 0
    %p143 = por %p141, %p142
    %p144 = scmp.ne.s32.totalorder %s132, %s133
    %p145 = scmp.eq.s32.totalorder %s18, 1
    %p146 = por %p144, %p145
    %p148 = scmp.ne.s32.totalorder %s133, %s147
    %p149 = scmp.eq.s32.totalorder %s18, 0
    %p150 = por %p148, %p149
    %s151 = ssub.s32 %s12, %s19
    %p152 = scmp.eq.s32.totalorder %s151, 0
    %s154 = sadd.s32 %s153, 1
    %s155 = scalar_select %p152, %s153, %s154
    %p158 = pneg %p152
    %p159 = scmp.eq.s32.totalorder %s12, 1
    %p160 = por %p158, %p159
    %p161 = scmp.ne.s32.totalorder %s153, %s156
    %p162 = scmp.eq.s32.totalorder %s12, 0
    %p163 = por %p161, %p162
    %p164 = scmp.ne.s32.totalorder %s153, %s156
    %p165 = scmp.eq.s32.totalorder %s17, 1
    %p166 = por %p164, %p165
    %p167 = scmp.ne.s32.totalorder %s156, %s157
    %p168 = scmp.eq.s32.totalorder %s17, 0
    %p169 = por %p167, %p168
    %p170 = scmp.ne.s32.totalorder %s156, %s157
    %p171 = scmp.eq.s32.totalorder %s18, 1
    %p172 = por %p170, %p171
    %p174 = scmp.ne.s32.totalorder %s157, %s173
    %p175 = scmp.eq.s32.totalorder %s18, 0
    %p176 = por %p174, %p175
    %p177 = scmp.le.s32.totalorder 1, %s12
    %p178 = scmp.lt.s32.totalorder %s12, 3
    %p179 = pnand %p177, %p178
    %p180 = pneg %p179
    // Predicated region
    $region9: #{_lambda_.1} parent=5 // pred_check
      _
    $region10: #{_lambda_.1} parent=5 // pred_check_branch
      %182 = sbr.rel (%p179) target = $region12
    $region11: #{_lambda_.1} parent=5 // pred_region
      %s183 = ssub.s32 %s12, 1
      // Predicated region
      $region13: #{_lambda_.1} parent=11 // pred_check
        %p184 = pneg %p59
      $region14: #{_lambda_.1} parent=11 // pred_check_branch
        %186 = sbr.rel (%p184) target = $region16
      $region15: #{_lambda_.1} parent=11 // pred_region
        _
      $region16: #{_lambda_.1} parent=11 // pred_fallthru
        _
      // Predicated region
      $region17: #{_lambda_.1} parent=11 // pred_check
        %p187 = pneg %p80
      $region18: #{_lambda_.1} parent=11 // pred_check_branch
        %189 = sbr.rel (%p187) target = $region20
      $region19: #{_lambda_.1} parent=11 // pred_region
        _
      $region20: #{_lambda_.1} parent=11 // pred_fallthru
        _
      // Predicated region
      $region21: #{_lambda_.1} parent=11 // pred_check
        %p190 = pneg %p101
      $region22: #{_lambda_.1} parent=11 // pred_check_branch
        %192 = sbr.rel (%p190) target = $region24
      $region23: #{_lambda_.1} parent=11 // pred_region
        _
      $region24: #{_lambda_.1} parent=11 // pred_fallthru
        _
      // Predicated region
      $region25: #{_lambda_.1} parent=11 // pred_check
        %p193 = pneg %p122
      $region26: #{_lambda_.1} parent=11 // pred_check_branch
        %195 = sbr.rel (%p193) target = $region28
      $region27: #{_lambda_.1} parent=11 // pred_region
        _
      $region28: #{_lambda_.1} parent=11 // pred_fallthru
        _
      // Predicated region
      $region29: #{_lambda_.1} parent=11 // pred_check
        %p196 = pneg %p143
      $region30: #{_lambda_.1} parent=11 // pred_check_branch
        %198 = sbr.rel (%p196) target = $region32
      $region31: #{_lambda_.1} parent=11 // pred_region
        _
      $region32: #{_lambda_.1} parent=11 // pred_fallthru
        _
    $region12: #{_lambda_.1} parent=5 // pred_fallthru
      _
    %p199 = scmp.lt.s32.totalorder %s12, 2
    // Predicated region
    $region33: #{_lambda_.1} parent=5 // pred_check
      %p200 = pneg %p199
    $region34: #{_lambda_.1} parent=5 // pred_check_branch
      %202 = sbr.rel (%p200) target = $region36
    $region35: #{_lambda_.1} parent=5 // pred_region
      // Predicated region
      $region37: #{_lambda_.1} parent=35 // pred_check
        %p203 = pneg %p32
      $region38: #{_lambda_.1} parent=35 // pred_check_branch
        %205 = sbr.rel (%p203) target = $region40
      $region39: #{_lambda_.1} parent=35 // pred_region
        %p206 = scmp.lt.s32.totalorder %s12, 1
        %s207 = scalar_select %p206, %s12, 1
        %s208 = smul.addr %s207, 3
        %s209 = smul.addr %s208, 4
        %s210 = scalar_lea.vmem %s0, %s209
      $region40: #{_lambda_.1} parent=35 // pred_fallthru
        _
    $region36: #{_lambda_.1} parent=5 // pred_fallthru
      _
    %p211 = scmp.le.s32.totalorder 1, %s12
    %p212 = scmp.lt.s32.totalorder %s12, 3
    %p213 = pnand %p211, %p212
    %p214 = pneg %p213
    // Predicated region
    $region41: #{_lambda_.1} parent=5 // pred_check
      _
    $region42: #{_lambda_.1} parent=5 // pred_check_branch
      %216 = sbr.rel (%p213) target = $region44
    $region43: #{_lambda_.1} parent=5 // pred_region
      %s217 = ssub.s32 %s12, 1
      %p218 = scmp.lt.s32.totalorder %s17, 1
      %s219 = scalar_select %p218, %s17, 1
      %s220 = smul.addr %s219, 3
      %s221 = smul.addr %s220, 4
      %s222 = scalar_lea.vmem %s0, %s221
      %p223 = pneg %p38
      %p224 = pneg %p35
      %p225 = pneg %p59
      %p226 = pneg %p56
      %p227 = pneg %p80
      %p228 = pneg %p77
      %p229 = pneg %p101
      %p230 = pneg %p98
      %p231 = pneg %p122
      %p232 = pneg %p119
      %p233 = pneg %p143
      %p234 = pneg %p140
      %p235 = pneg %p169
      %p236 = pneg %p166
      %p237 = scmp.lt.s32.totalorder %s17, 1
      %s238 = scalar_select %p237, %s17, 1
      %s239 = smul.addr %s238, 3
      %s240 = smul.addr %s239, 8
      %s241 = scalar_lea.vmem %s6, %s240
      %p242 = scmp.lt.s32.totalorder %s17, 1
      %s243 = scalar_select %p242, %s17, 1
      %s244 = smul.addr %s243, 3
      %s245 = smul.addr %s244, 4
      %s246 = scalar_lea.vmem %s0, %s245
      %p247 = scmp.lt.s32.totalorder %s17, 1
      %s248 = scalar_select %p247, %s17, 1
      %s249 = smul.addr %s248, 3
      %s250 = smul.addr %s249, 8
      %s251 = scalar_lea.vmem %s6, %s250
      %253 = vst [vmem:[#allocation2] sm:$0xff] 0
      %254 = vst [vmem:[#allocation2 + $0x8] sm:$0xff] 0
      %255 = vst [vmem:[#allocation2 + $0x10] sm:$0xf] 0
      %v256 = vld [vmem:[%s246] sm:$0xff]
      %v257 = vld [vmem:[%s246 + $0x8] sm:$0xf]
      %v260 = vunpack.c.l.b16 %v256
      %v261 = vunpack.c.h.b16 %v256
      %v262 = vunpack.c.l.b16 %v257
      %v263 = vpack.c.b16 %v260, %v260
      %v264 = vpack.c.b16 %v261, %v261
      %v265 = vpack.c.b16 %v262, %v262
      %266 = vrot.lane.b32.xlu0 %v263, 127
      %v267 = vpop.permute.xlu0 %266
      %268 = vrot.lane.b32.xlu0 %v264, 127
      %v269 = vpop.permute.xlu0 %268
      %270 = vrot.lane.b32.xlu0 %v265, 127
      %v271 = vpop.permute.xlu0 %270
      %vm272 = vcmask 1039360
      %v273 = vsel %vm272, %v267, %v269
      %v274 = vsel %vm272, %v269, %v271
      %275 = vrot.lane.b32.xlu0 %v263, 126
      %v276 = vpop.permute.xlu0 %275
      %277 = vrot.lane.b32.xlu0 %v264, 126
      %v278 = vpop.permute.xlu0 %277
      %279 = vrot.lane.b32.xlu0 %v265, 126
      %v280 = vpop.permute.xlu0 %279
      %vm281 = vcmask 1031168
      %v282 = vsel %vm281, %v276, %v278
      %v283 = vsel %vm281, %v278, %v280
      %284 = vrot.lane.b32.xlu0 %v263, 110
      %v285 = vpop.permute.xlu0 %284
      %286 = vrot.lane.b32.xlu0 %v264, 110
      %v287 = vpop.permute.xlu0 %286
      %288 = vrot.lane.b32.xlu0 %v265, 110
      %v289 = vpop.permute.xlu0 %288
      %vm290 = vcmask 900096
      %v291 = vsel %vm290, %v285, %v287
      %v292 = vsel %vm290, %v287, %v289
      %293 = vrot.lane.b32.xlu0 %v263, 109
      %v294 = vpop.permute.xlu0 %293
      %295 = vrot.lane.b32.xlu0 %v264, 109
      %v296 = vpop.permute.xlu0 %295
      %297 = vrot.lane.b32.xlu0 %v265, 109
      %v298 = vpop.permute.xlu0 %297
      %vm299 = vcmask 891904
      %v300 = vsel %vm299, %v294, %v296
      %v301 = vsel %vm299, %v296, %v298
      %302 = vrot.lane.b32.xlu0 %v263, 108
      %v303 = vpop.permute.xlu0 %302
      %304 = vrot.lane.b32.xlu0 %v264, 108
      %v305 = vpop.permute.xlu0 %304
      %306 = vrot.lane.b32.xlu0 %v265, 108
      %v307 = vpop.permute.xlu0 %306
      %vm308 = vcmask 883712
      %v309 = vsel %vm308, %v303, %v305
      %v310 = vsel %vm308, %v305, %v307
      %311 = vrot.lane.b32.xlu0 %v263, 92
      %v312 = vpop.permute.xlu0 %311
      %313 = vrot.lane.b32.xlu0 %v264, 92
      %v314 = vpop.permute.xlu0 %313
      %315 = vrot.lane.b32.xlu0 %v265, 92
      %v316 = vpop.permute.xlu0 %315
      %vm317 = vcmask 752640
      %v318 = vsel %vm317, %v312, %v314
      %v319 = vsel %vm317, %v314, %v316
      %320 = vrot.lane.b32.xlu0 %v263, 91
      %v321 = vpop.permute.xlu0 %320
      %322 = vrot.lane.b32.xlu0 %v264, 91
      %v323 = vpop.permute.xlu0 %322
      %324 = vrot.lane.b32.xlu0 %v265, 91
      %v325 = vpop.permute.xlu0 %324
      %vm326 = vcmask 744448
      %v327 = vsel %vm326, %v321, %v323
      %v328 = vsel %vm326, %v323, %v325
      %329 = vrot.lane.b32.xlu0 %v263, 90
      %v330 = vpop.permute.xlu0 %329
      %331 = vrot.lane.b32.xlu0 %v264, 90
      %v332 = vpop.permute.xlu0 %331
      %333 = vrot.lane.b32.xlu0 %v265, 90
      %v334 = vpop.permute.xlu0 %333
      %vm335 = vcmask 736256
      %v336 = vsel %vm335, %v330, %v332
      %v337 = vsel %vm335, %v332, %v334
      %vm338 = vcmask 1043456
      %v341 = vsel %vm338, %v263, %v273
      %v345 = vsel %vm338, %v264, %v274
      %v349 = vsel %vm338, %v265, %v271
      %v353 = vsel %vm338, %v282, %v291
      %v357 = vsel %vm338, %v283, %v292
      %v361 = vsel %vm338, %v280, %v289
      %v365 = vsel %vm338, %v300, %v309
      %v369 = vsel %vm338, %v301, %v310
      %v373 = vsel %vm338, %v298, %v307
      %v377 = vsel %vm338, %v318, %v327
      %v381 = vsel %vm338, %v319, %v328
      %v385 = vsel %vm338, %v316, %v325
      %v387 = vld [vmem:[%s1] sm:$0xf]
      %v388 = vld [vmem:[%s3] sm:$0xff]
      %390 = vset.pattern.permute.xlu0 0
      %391 = vperm.xlu0 %390, %v388
      %v392 = vpop.permute.xlu0 %391
      %vm394 = vcmask 588800
      %v396 = vsel %vm394, %v387, 0
      %v399 = vsel %vm338, %v336, 0
      %v402 = vsel %vm338, %v337, 0
      %v405 = vsel %vm338, %v334, 0
      %407 = vmatprep.subr.bf16.mxu0 %v345
      %408 = vmatpush1.bf16.msra.mxu0 %v341
      %409 = vmatprep.subr.bf16.mxu0 %v357
      %410 = vmatpush1.bf16.msra.mxu0 %v353
      %411 = vmatprep.subr.bf16.mxu0 %v369
      %412 = vmatpush1.bf16.msra.mxu0 %v365
      %413 = vmatprep.subr.bf16.mxu0 %v381
      %414 = vmatpush1.bf16.msra.mxu0 %v377
      %415 = vmatprep.subr.bf16.mxu0 %v402
      %416 = vmatpush1.bf16.msra.mxu0 %v399
      %417 = vmatprep.subr.bf16.mxu0 0
      %418 = vmatpush1.bf16.msra.mxu0 0
      %419 = vmatprep.subr.bf16.mxu0 0
      %420 = vmatpush1.bf16.msra.mxu0 0
      %421 = vmatprep.subr.bf16.mxu0 0
      %422 = vmatpush1.bf16.msra.mxu0 0
      %423 = vmatprep.subr.bf16.mxu0 0
      %424 = vmatpush1.bf16.msra.mxu0 0
      %425 = vmatprep.subr.bf16.mxu0 0
      %426 = vmatpush1.bf16.msra.mxu0 0
      %427 = vmatprep.subr.bf16.mxu0 0
      %428 = vmatpush1.bf16.msra.mxu0 0
      %429 = vmatprep.subr.bf16.mxu0 0
      %430 = vmatpush1.bf16.msra.mxu0 0
      %431 = vmatprep.subr.bf16.mxu0 0
      %432 = vmatpush1.bf16.msra.mxu0 0
      %433 = vmatprep.subr.bf16.mxu0 0
      %434 = vmatpush1.bf16.msra.mxu0 0
      %435 = vmatprep.subr.bf16.mxu0 0
      %436 = vmatpush1.bf16.msra.mxu0 0
      %437 = vmatprep.subr.bf16.mxu0 0
      %438 = vmatpush1.bf16.msra.mxu0 0
      %439 = vmatprep.mubr.bf16.mxu0 0
      %440 = vmatmul.mubr.bf16.gmra.mrb[0].mxu0 %v396
      %v441 = vpop.f32.mrb[0].mxu0
      %v442 = vadd.f32 %v392, %v441
      %v443 = vpop.f32.mrb[0].mxu0
      %v444 = vadd.f32 %v392, %v443
      %v445 = vpop.f32.mrb[0].mxu0
      %v446 = vpop.f32.mrb[0].mxu0
      %447 = vdwg.mxu0
      %448 = vmatprep.subr.bf16.mxu0 0
      %449 = vmatpush1.bf16.msra.mxu0 %v349
      %450 = vmatprep.subr.bf16.mxu0 0
      %451 = vmatpush1.bf16.msra.mxu0 %v361
      %452 = vmatprep.subr.bf16.mxu0 0
      %453 = vmatpush1.bf16.msra.mxu0 %v373
      %454 = vmatprep.subr.bf16.mxu0 0
      %455 = vmatpush1.bf16.msra.mxu0 %v385
      %456 = vmatprep.subr.bf16.mxu0 0
      %457 = vmatpush1.bf16.msra.mxu0 %v405
      %458 = vmatprep.subr.bf16.mxu0 0
      %459 = vmatpush1.bf16.msra.mxu0 0
      %460 = vmatprep.subr.bf16.mxu0 0
      %461 = vmatpush1.bf16.msra.mxu0 0
      %462 = vmatprep.subr.bf16.mxu0 0
      %463 = vmatpush1.bf16.msra.mxu0 0
      %464 = vmatprep.subr.bf16.mxu0 0
      %465 = vmatpush1.bf16.msra.mxu0 0
      %466 = vmatprep.subr.bf16.mxu0 0
      %467 = vmatpush1.bf16.msra.mxu0 0
      %468 = vmatprep.subr.bf16.mxu0 0
      %469 = vmatpush1.bf16.msra.mxu0 0
      %470 = vmatprep.subr.bf16.mxu0 0
      %471 = vmatpush1.bf16.msra.mxu0 0
      %472 = vmatprep.subr.bf16.mxu0 0
      %473 = vmatpush1.bf16.msra.mxu0 0
      %474 = vmatprep.subr.bf16.mxu0 0
      %475 = vmatpush1.bf16.msra.mxu0 0
      %476 = vmatprep.subr.bf16.mxu0 0
      %477 = vmatpush1.bf16.msra.mxu0 0
      %478 = vmatprep.subr.bf16.mxu0 0
      %479 = vmatpush1.bf16.msra.mxu0 0
      %480 = vmatprep.mubr.bf16.mxu0 0
      %481 = vmatmul.mubr.bf16.gmra.mrb[0].mxu0 %v396
      %v482 = vpop.f32.mrb[0].mxu0
      %v483 = vadd.f32 %v392, %v482
      %v484 = vpop.f32.mrb[0].mxu0
      %v485 = vpop.f32.mrb[0].mxu0
      %v486 = vpop.f32.mrb[0].mxu0
      %487 = vdwg.mxu0
      %vm488 = vcmp.ge.f32.partialorder %v442, 0.0
      %vm489 = vcmp.ge.f32.partialorder %v444, 0.0
      %vm490 = vcmp.ge.f32.partialorder %v483, 0.0
      %v491 = vmul.f32 %v442, 0.2
      %v492 = vmul.f32 %v444, 0.2
      %v493 = vmul.f32 %v483, 0.2
      %v494 = vsel %vm488, %v442, %v491
      %v495 = vsel %vm489, %v444, %v492
      %v496 = vsel %vm490, %v483, %v493
      %v497 = vld [vmem:[%s5] sm:$0x7]
      %v499 = vlaneseq
      %v500 = vshrl.u32 %v499, 7
      %v501 = vsub.s32 0, %v500
      %v502 = vrot.slane %v497, %v501
      %v503 = vlaneseq
      %v504 = vshrl.u32 %v503, 7
      %v505 = vsub.s32 1, %v504
      %v506 = vrot.slane %v497, %v505
      %v507 = vlaneseq
      %v508 = vshrl.u32 %v507, 7
      %v509 = vsub.s32 2, %v508
      %v510 = vrot.slane %v497, %v509
      %v514 = vmul.f32 %v494, %v502
      %v515 = vmul.f32 %v495, %v506
      %v516 = vmul.f32 %v496, %v510
      %v517 = vpack.c.bf16 %v514, %v514
      %v518 = vpack.c.bf16 %v515, %v515
      %v519 = vpack.c.bf16 %v516, %v516
      %v523 = vunpack.c.l.b16 %v517
      %v524 = vunpack.c.l.b16 %v518
      %v525 = vunpack.c.l.b16 %v519
      %v526 = vpack.c.b16 %v524, %v523
      %v527 = vpack.c.b16 %v525, %v525
      %530 = vst [vmem:[#allocation2 + $0x4] sm:$0xff] %v526
      %vm531 = vcmask 257024
      %532 = vst.msk [vmem:[#allocation2 + $0xc] sm:$0xf] %vm531, %v527
      %v533 = vld [vmem:[#allocation2] sm:$0xff]
      %v534 = vld [vmem:[#allocation2 + $0x8] sm:$0xff]
      %v535 = vld [vmem:[#allocation2 + $0x10] sm:$0xf]
      %v538 = vunpack.c.l.b16 %v533
      %v539 = vunpack.c.h.b16 %v533
      %v540 = vunpack.c.l.b16 %v534
      %v541 = vunpack.c.h.b16 %v534
      %v542 = vpack.c.b16 %v538, %v538
      %v543 = vpack.c.b16 %v539, %v539
      %v544 = vpack.c.b16 %v540, %v540
      %v545 = vpack.c.b16 %v541, %v541
      %546 = vrot.lane.b32.xlu0 %v542, 127
      %v547 = vpop.permute.xlu0 %546
      %548 = vrot.lane.b32.xlu0 %v543, 127
      %v549 = vpop.permute.xlu0 %548
      %550 = vrot.lane.b32.xlu0 %v544, 127
      %v551 = vpop.permute.xlu0 %550
      %552 = vrot.lane.b32.xlu0 %v545, 127
      %v553 = vpop.permute.xlu0 %552
      %v554 = vsel %vm272, %v547, %v549
      %v555 = vsel %vm272, %v549, %v551
      %v556 = vsel %vm272, %v551, %v553
      %557 = vrot.lane.b32.xlu0 %v542, 126
      %v558 = vpop.permute.xlu0 %557
      %559 = vrot.lane.b32.xlu0 %v543, 126
      %v560 = vpop.permute.xlu0 %559
      %561 = vrot.lane.b32.xlu0 %v544, 126
      %v562 = vpop.permute.xlu0 %561
      %563 = vrot.lane.b32.xlu0 %v545, 126
      %v564 = vpop.permute.xlu0 %563
      %v565 = vsel %vm281, %v558, %v560
      %v566 = vsel %vm281, %v560, %v562
      %v567 = vsel %vm281, %v562, %v564
      %568 = vrot.lane.b32.xlu0 %v542, 110
      %v569 = vpop.permute.xlu0 %568
      %570 = vrot.lane.b32.xlu0 %v543, 110
      %v571 = vpop.permute.xlu0 %570
      %572 = vrot.lane.b32.xlu0 %v544, 110
      %v573 = vpop.permute.xlu0 %572
      %574 = vrot.lane.b32.xlu0 %v545, 110
      %v575 = vpop.permute.xlu0 %574
      %v576 = vsel %vm290, %v569, %v571
      %v577 = vsel %vm290, %v571, %v573
      %v578 = vsel %vm290, %v573, %v575
      %579 = vrot.lane.b32.xlu0 %v543, 109
      %v580 = vpop.permute.xlu0 %579
      %581 = vrot.lane.b32.xlu0 %v544, 109
      %v582 = vpop.permute.xlu0 %581
      %583 = vrot.lane.b32.xlu0 %v545, 109
      %v584 = vpop.permute.xlu0 %583
      %v585 = vsel %vm299, %v580, %v582
      %v586 = vsel %vm299, %v582, %v584
      %v588 = vunpack.c.l.b16 %v535
      %v589 = vpack.c.b16 %v588, %v588
      %590 = vrot.lane.b32.xlu0 %v543, 108
      %v591 = vpop.permute.xlu0 %590
      %592 = vrot.lane.b32.xlu0 %v544, 108
      %v593 = vpop.permute.xlu0 %592
      %594 = vrot.lane.b32.xlu0 %v545, 108
      %v595 = vpop.permute.xlu0 %594
      %596 = vrot.lane.b32.xlu0 %v589, 108
      %v597 = vpop.permute.xlu0 %596
      %v598 = vsel %vm308, %v591, %v593
      %v599 = vsel %vm308, %v593, %v595
      %v600 = vsel %vm308, %v595, %v597
      %601 = vrot.lane.b32.xlu0 %v543, 92
      %v602 = vpop.permute.xlu0 %601
      %603 = vrot.lane.b32.xlu0 %v544, 92
      %v604 = vpop.permute.xlu0 %603
      %605 = vrot.lane.b32.xlu0 %v545, 92
      %v606 = vpop.permute.xlu0 %605
      %607 = vrot.lane.b32.xlu0 %v589, 92
      %v608 = vpop.permute.xlu0 %607
      %v609 = vsel %vm317, %v602, %v604
      %v610 = vsel %vm317, %v604, %v606
      %v611 = vsel %vm317, %v606, %v608
      %612 = vrot.lane.b32.xlu0 %v543, 91
      %v613 = vpop.permute.xlu0 %612
      %614 = vrot.lane.b32.xlu0 %v544, 91
      %v615 = vpop.permute.xlu0 %614
      %616 = vrot.lane.b32.xlu0 %v545, 91
      %v617 = vpop.permute.xlu0 %616
      %618 = vrot.lane.b32.xlu0 %v589, 91
      %v619 = vpop.permute.xlu0 %618
      %v620 = vsel %vm326, %v613, %v615
      %v621 = vsel %vm326, %v615, %v617
      %v622 = vsel %vm326, %v617, %v619
      %623 = vrot.lane.b32.xlu0 %v543, 90
      %v624 = vpop.permute.xlu0 %623
      %625 = vrot.lane.b32.xlu0 %v544, 90
      %v626 = vpop.permute.xlu0 %625
      %627 = vrot.lane.b32.xlu0 %v545, 90
      %v628 = vpop.permute.xlu0 %627
      %629 = vrot.lane.b32.xlu0 %v589, 90
      %v630 = vpop.permute.xlu0 %629
      %v631 = vsel %vm335, %v624, %v626
      %v632 = vsel %vm335, %v626, %v628
      %v633 = vsel %vm335, %v628, %v630
      %v636 = vsel %vm338, %v542, %v554
      %v639 = vsel %vm338, %v543, %v555
      %v642 = vsel %vm338, %v544, %v556
      %v645 = vsel %vm338, %v545, %v553
      %v648 = vsel %vm338, %v565, %v576
      %v651 = vsel %vm338, %v566, %v577
      %v654 = vsel %vm338, %v567, %v578
      %v657 = vsel %vm338, %v564, %v575
      %v660 = vsel %vm338, %v580, %v591
      %v663 = vsel %vm338, %v585, %v598
      %v666 = vsel %vm338, %v586, %v599
      %v669 = vsel %vm338, %v584, %v600
      %v672 = vsel %vm338, %v602, %v613
      %v675 = vsel %vm338, %v609, %v620
      %v678 = vsel %vm338, %v610, %v621
      %v681 = vsel %vm338, %v611, %v622
      %v682 = vld [vmem:[%s2] sm:$0xf]
      %v683 = vld [vmem:[%s4] sm:$0xff]
      %685 = vset.pattern.permute.xlu0 0
      %686 = vperm.xlu0 %685, %v683
      %v687 = vpop.permute.xlu0 %686
      %705 = vrot.lane.b32.xlu0 %v636, 19
      %v706 = vpop.permute.xlu0 %705
      %707 = vrot.lane.b32.xlu0 %v639, 19
      %v708 = vpop.permute.xlu0 %707
      %709 = vrot.lane.b32.xlu0 %v642, 19
      %v710 = vpop.permute.xlu0 %709
      %711 = vrot.lane.b32.xlu0 %v645, 19
      %v712 = vpop.permute.xlu0 %711
      %713 = vrot.lane.b32.xlu0 %v648, 19
      %v714 = vpop.permute.xlu0 %713
      %715 = vrot.lane.b32.xlu0 %v651, 19
      %v716 = vpop.permute.xlu0 %715
      %717 = vrot.lane.b32.xlu0 %v654, 19
      %v718 = vpop.permute.xlu0 %717
      %719 = vrot.lane.b32.xlu0 %v657, 19
      %v720 = vpop.permute.xlu0 %719
      %721 = vrot.lane.b32.xlu0 %v660, 19
      %v722 = vpop.permute.xlu0 %721
      %723 = vrot.lane.b32.xlu0 %v663, 19
      %v724 = vpop.permute.xlu0 %723
      %725 = vrot.lane.b32.xlu0 %v666, 19
      %v726 = vpop.permute.xlu0 %725
      %727 = vrot.lane.b32.xlu0 %v669, 19
      %v728 = vpop.permute.xlu0 %727
      %729 = vrot.lane.b32.xlu0 %v672, 19
      %v730 = vpop.permute.xlu0 %729
      %731 = vrot.lane.b32.xlu0 %v675, 19
      %v732 = vpop.permute.xlu0 %731
      %733 = vrot.lane.b32.xlu0 %v678, 19
      %v734 = vpop.permute.xlu0 %733
      %735 = vrot.lane.b32.xlu0 %v681, 19
      %v736 = vpop.permute.xlu0 %735
      %737 = vrot.lane.b32.xlu0 %v624, 19
      %v738 = vpop.permute.xlu0 %737
      %739 = vrot.lane.b32.xlu0 %v631, 19
      %v740 = vpop.permute.xlu0 %739
      %741 = vrot.lane.b32.xlu0 %v632, 19
      %v742 = vpop.permute.xlu0 %741
      %743 = vrot.lane.b32.xlu0 %v633, 19
      %v744 = vpop.permute.xlu0 %743
      %vm745 = vcmask 154624
      %v746 = vsel %vm745, %v706, %v708
      %v747 = vsel %vm745, %v708, %v710
      %v748 = vsel %vm745, %v710, %v712
      %v749 = vsel %vm745, %v714, %v716
      %v750 = vsel %vm745, %v716, %v718
      %v751 = vsel %vm745, %v718, %v720
      %v752 = vsel %vm745, %v722, %v724
      %v753 = vsel %vm745, %v724, %v726
      %v754 = vsel %vm745, %v726, %v728
      %v755 = vsel %vm745, %v730, %v732
      %v756 = vsel %vm745, %v732, %v734
      %v757 = vsel %vm745, %v734, %v736
      %v758 = vsel %vm745, %v738, %v740
      %v759 = vsel %vm745, %v740, %v742
      %v760 = vsel %vm745, %v742, %v744
      %v774 = vsel %vm394, %v682, 0
      %v777 = vsel %vm338, %v758, 0
      %v780 = vsel %vm338, %v759, 0
      %v783 = vsel %vm338, %v760, 0
      %785 = vmatprep.subr.bf16.mxu0 %v747
      %786 = vmatpush1.bf16.msra.mxu0 %v746
      %787 = vmatprep.subr.bf16.mxu0 %v750
      %788 = vmatpush1.bf16.msra.mxu0 %v749
      %789 = vmatprep.subr.bf16.mxu0 %v753
      %790 = vmatpush1.bf16.msra.mxu0 %v752
      %791 = vmatprep.subr.bf16.mxu0 %v756
      %792 = vmatpush1.bf16.msra.mxu0 %v755
      %793 = vmatprep.subr.bf16.mxu0 %v780
      %794 = vmatpush1.bf16.msra.mxu0 %v777
      %795 = vmatprep.subr.bf16.mxu0 0
      %796 = vmatpush1.bf16.msra.mxu0 0
      %797 = vmatprep.subr.bf16.mxu0 0
      %798 = vmatpush1.bf16.msra.mxu0 0
      %799 = vmatprep.subr.bf16.mxu0 0
      %800 = vmatpush1.bf16.msra.mxu0 0
      %801 = vmatprep.subr.bf16.mxu0 0
      %802 = vmatpush1.bf16.msra.mxu0 0
      %803 = vmatprep.subr.bf16.mxu0 0
      %804 = vmatpush1.bf16.msra.mxu0 0
      %805 = vmatprep.subr.bf16.mxu0 0
      %806 = vmatpush1.bf16.msra.mxu0 0
      %807 = vmatprep.subr.bf16.mxu0 0
      %808 = vmatpush1.bf16.msra.mxu0 0
      %809 = vmatprep.subr.bf16.mxu0 0
      %810 = vmatpush1.bf16.msra.mxu0 0
      %811 = vmatprep.subr.bf16.mxu0 0
      %812 = vmatpush1.bf16.msra.mxu0 0
      %813 = vmatprep.subr.bf16.mxu0 0
      %814 = vmatpush1.bf16.msra.mxu0 0
      %815 = vmatprep.subr.bf16.mxu0 0
      %816 = vmatpush1.bf16.msra.mxu0 0
      %817 = vmatprep.mubr.bf16.mxu0 0
      %818 = vmatmul.mubr.bf16.gmra.mrb[0].mxu0 %v774
      %v819 = vpop.f32.mrb[0].mxu0
      %v820 = vadd.f32 %v687, %v819
      %v821 = vpop.f32.mrb[0].mxu0
      %v822 = vadd.f32 %v687, %v821
      %v823 = vpop.f32.mrb[0].mxu0
      %v824 = vpop.f32.mrb[0].mxu0
      %825 = vdwg.mxu0
      %826 = vmatprep.subr.bf16.mxu0 0
      %827 = vmatpush1.bf16.msra.mxu0 %v748
      %828 = vmatprep.subr.bf16.mxu0 0
      %829 = vmatpush1.bf16.msra.mxu0 %v751
      %830 = vmatprep.subr.bf16.mxu0 0
      %831 = vmatpush1.bf16.msra.mxu0 %v754
      %832 = vmatprep.subr.bf16.mxu0 0
      %833 = vmatpush1.bf16.msra.mxu0 %v757
      %834 = vmatprep.subr.bf16.mxu0 0
      %835 = vmatpush1.bf16.msra.mxu0 %v783
      %836 = vmatprep.subr.bf16.mxu0 0
      %837 = vmatpush1.bf16.msra.mxu0 0
      %838 = vmatprep.subr.bf16.mxu0 0
      %839 = vmatpush1.bf16.msra.mxu0 0
      %840 = vmatprep.subr.bf16.mxu0 0
      %841 = vmatpush1.bf16.msra.mxu0 0
      %842 = vmatprep.subr.bf16.mxu0 0
      %843 = vmatpush1.bf16.msra.mxu0 0
      %844 = vmatprep.subr.bf16.mxu0 0
      %845 = vmatpush1.bf16.msra.mxu0 0
      %846 = vmatprep.subr.bf16.mxu0 0
      %847 = vmatpush1.bf16.msra.mxu0 0
      %848 = vmatprep.subr.bf16.mxu0 0
      %849 = vmatpush1.bf16.msra.mxu0 0
      %850 = vmatprep.subr.bf16.mxu0 0
      %851 = vmatpush1.bf16.msra.mxu0 0
      %852 = vmatprep.subr.bf16.mxu0 0
      %853 = vmatpush1.bf16.msra.mxu0 0
      %854 = vmatprep.subr.bf16.mxu0 0
      %855 = vmatpush1.bf16.msra.mxu0 0
      %856 = vmatprep.subr.bf16.mxu0 0
      %857 = vmatpush1.bf16.msra.mxu0 0
      %858 = vmatprep.mubr.bf16.mxu0 0
      %859 = vmatmul.mubr.bf16.gmra.mrb[0].mxu0 %v774
      %v860 = vpop.f32.mrb[0].mxu0
      %v861 = vadd.f32 %v687, %v860
      %v862 = vpop.f32.mrb[0].mxu0
      %v863 = vpop.f32.mrb[0].mxu0
      %v864 = vpop.f32.mrb[0].mxu0
      %865 = vdwg.mxu0
      %vm866 = vcmp.ge.f32.partialorder %v820, 0.0
      %vm867 = vcmp.ge.f32.partialorder %v822, 0.0
      %vm868 = vcmp.ge.f32.partialorder %v861, 0.0
      %v869 = vmul.f32 %v820, 0.2
      %v870 = vmul.f32 %v822, 0.2
      %v871 = vmul.f32 %v861, 0.2
      %v872 = vsel %vm866, %v820, %v869
      %v873 = vsel %vm867, %v822, %v870
      %v874 = vsel %vm868, %v861, %v871
      %875 = vst [vmem:[%s251] sm:$0xff] %v872
      %876 = vst [vmem:[%s251 + $0x8] sm:$0xff] %v873
      %877 = vst [vmem:[%s251 + $0x10] sm:$0xff] %v874
      %p878 = scmp.lt.s32.totalorder %s17, 1
      %s879 = scalar_select %p878, %s17, 1
      %s880 = smul.addr %s879, 3
      %s881 = smul.addr %s880, 8
      %s882 = scalar_lea.vmem %s6, %s881
      // Predicated region
      $region45: #{_lambda_.1} parent=43 // pred_check
        %p883 = pneg %p166
      $region46: #{_lambda_.1} parent=43 // pred_check_branch
        %885 = sbr.rel (%p883) target = $region48
      $region47: #{_lambda_.1} parent=43 // pred_region
        _
      $region48: #{_lambda_.1} parent=43 // pred_fallthru
        _
    $region44: #{_lambda_.1} parent=5 // pred_fallthru
      _
    %p886 = scmp.le.s32.totalorder 2, %s12
    // Predicated region
    $region49: #{_lambda_.1} parent=5 // pred_check
      %p887 = pneg %p886
    $region50: #{_lambda_.1} parent=5 // pred_check_branch
      %889 = sbr.rel (%p887) target = $region52
    $region51: #{_lambda_.1} parent=5 // pred_region
      %s890 = ssub.s32 %s12, 2
      // Predicated region
      $region53: #{_lambda_.1} parent=51 // pred_check
        %p891 = pneg %p172
      $region54: #{_lambda_.1} parent=51 // pred_check_branch
        %893 = sbr.rel (%p891) target = $region56
      $region55: #{_lambda_.1} parent=51 // pred_region
        %p894 = scmp.lt.s32.totalorder %s18, 1
        %s895 = scalar_select %p894, %s18, 1
        %s896 = smul.addr %s895, 3
        %s897 = smul.addr %s896, 8
        %s898 = scalar_lea.vmem %s6, %s897
      $region56: #{_lambda_.1} parent=51 // pred_fallthru
        _
    $region52: #{_lambda_.1} parent=5 // pred_fallthru
      _
  $region6: #{_lambda_.1} parent=0 // loop_footer
    %s16 = sadd.s32 1, %s12
  $region7: #{_lambda_.1} parent=0 // loop_footer_branch
    %11 = sbr.rel target = $region3
  $region8: #{_lambda_.1} parent=0 // loop_exit
    _

</llo_original>
